<compile_context>
chip_gen: v7x
topology: tpu7x:2x2x1
jax: 0.10.0
libtpu: 0.0.40
codegen_flags: <defaults>
</compile_context>

<pallas_src>
import jax
import jax.numpy as jnp
from jax.experimental import pallas as pl
from jax.experimental.pallas import tpu as pltpu

KH = KW = 4
STRIDE = 2
PAD = 1
BN_EPS = 1e-5
LEAKY_SLOPE = 0.2
LANE = 128


# ----------------------------------------------------------------------------
# Pass 1: conv (single fused [TM, 16*Cin] @ [16*Cin, Coutp] matmul) + BN stats
# ----------------------------------------------------------------------------
def _conv_stats_kernel(xs0_ref, xs1_ref, w_ref, y_ref, stats_ref):
    # xs0_ref / xs1_ref : [TR, OW+1, 4*Cin] bf16   (packed rows oy+0 / oy+1)
    # w_ref             : [16*Cin, Coutp]   bf16   (K = (dy, dx, ph, pw, ci))
    # y_ref             : [TR*OW, Coutp]    bf16   (raw conv output tile)
    # stats_ref         : [1, 2, Coutp]     f32    (per-core sum / sumsq accum)
    x0 = xs0_ref[...]
    x1 = xs1_ref[...]
    tr, owp1, c4 = x0.shape
    ow = owp1 - 1

    # Assemble the fused-K operand directly in bf16 (no f32 round-trip).
    a = jnp.concatenate(
        [x0[:, :ow, :], x0[:, 1:, :], x1[:, :ow, :], x1[:, 1:, :]], axis=-1
    ).reshape(tr * ow, 4 * c4)

    y = jnp.dot(a, w_ref[...], preferred_element_type=jnp.float32)

    # One-pass BN stats (sum, sum of squares), accumulated across the
    # "arbitrary" grid axis into this core's resident partial block.
    @pl.when(pl.program_id(1) == 0)
    def _():
        stats_ref[...] = jnp.zeros_like(stats_ref)

    s = jnp.sum(y, axis=0, keepdims=True)
    sq = jnp.sum(y * y, axis=0, keepdims=True)
    stats_ref[...] += jnp.concatenate([s, sq], axis=0)[None]

    y_ref[...] = y.astype(y_ref.dtype)


# ----------------------------------------------------------------------------
# Pass 2: folded BN (y*scale + shift) + LeakyReLU, emitted directly as NCHW
# ----------------------------------------------------------------------------
def _norm_act_nchw_kernel(y_ref, scale_ref, shift_ref, o_ref):
    # y_ref  : [TS, Coutp] bf16   (one spatial tile of one batch image)
    # scale  : [1, Coutp]  f32
    # shift  : [1, Coutp]  f32
    # o_ref  : [Cout, TS]          (channel-major -> NCHW with no extra pass)
    y = y_ref[...].astype(jnp.float32)
    yhat = y * scale_ref[...] + shift_ref[...]
    act = jnp.where(yhat >= 0.0, yhat, LEAKY_SLOPE * yhat)
    cout = o_ref.shape[0]
    o_ref[...] = jnp.transpose(act)[:cout, :].astype(o_ref.dtype)


# ----------------------------------------------------------------------------
# Wrapper helpers
# ----------------------------------------------------------------------------
def _vmem_limit_bytes():
    # v5e/v6e have 128 MiB physical VMEM, v7x has 64 MiB; leave ~25% headroom.
    try:
        cap = pltpu.get_tpu_info().vmem_capacity_bytes
    except Exception:
        cap = 64 * 1024 * 1024  # conservative (v7x-sized) fallback
    return int(min(96 * 1024 * 1024, (cap * 3) // 4))


def _pick_row_tile(noh, ow, target_out_rows):
    """tr | noh with tr*ow a multiple of 8, aiming for ~target_out_rows rows."""
    cap = max(1, min(noh, max(1, target_out_rows // max(1, ow))))
    for d in range(cap, 0, -1):
        if noh % d == 0 and (d * ow) % 8 == 0:
            return d
    return noh  # single full block is always layout-legal


def _pick_spatial_tile(ohw, target):
    if ohw <= target:
        return ohw
    for d in range(min(ohw, target), 127, -1):
        if ohw % d == 0 and d % 128 == 0:
            return d
    return ohw


# ----------------------------------------------------------------------------
# EncBlock forward
# ----------------------------------------------------------------------------
def enc_block(x, conv_weight, gamma, beta, *, row_tile_target=1024,
              spatial_tile_target=2048, out_dtype=jnp.float32):
    """
    x:           [N, Cin, H, W]   (NCHW, like PyTorch; H, W even)
    conv_weight: [Cout, Cin, 4, 4]
    gamma, beta: [Cout]
    returns:     [N, Cout, H//2, W//2]  out_dtype (default float32)
    """
    n, cin, h, w = x.shape
    cout = conv_weight.shape[0]
    assert conv_weight.shape == (cout, cin, KH, KW)
    assert h % 2 == 0 and w % 2 == 0

    oh = (h + 2 * PAD - KH) // STRIDE + 1  # = h // 2
    ow = (w + 2 * PAD - KW) // STRIDE + 1  # = w // 2
    c4 = 4 * cin
    coutp = ((cout + LANE - 1) // LANE) * LANE  # lane-dense padded channels
    noh = n * oh
    m = n * oh * ow
    ohw = oh * ow
    vmem_limit = _vmem_limit_bytes()

    # ---- layout-only preprocessing in bf16 (no HBM im2col) -------------------
    x_bf = x.astype(jnp.bfloat16)
    x_nhwc = jnp.transpose(x_bf, (0, 2, 3, 1))
    xpad = jnp.pad(x_nhwc, ((0, 0), (PAD, PAD), (PAD, PAD), (0, 0)))
    # space-to-depth(2): [N, OH+1, OW+1, 4*Cin], channel = (ph*2 + pw)*Cin + ci
    xs = xpad.reshape(n, oh + 1, 2, ow + 1, 2, cin)
    xs = xs.transpose(0, 1, 3, 2, 4, 5).reshape(n, oh + 1, ow + 1, c4)
    xs0 = xs[:, :oh].reshape(noh, ow + 1, c4)   # packed rows oy + 0 (kh in {0,1})
    xs1 = xs[:, 1:].reshape(noh, ow + 1, c4)    # packed rows oy + 1 (kh in {2,3})

    # ---- fused weight matrix: [16*Cin, Coutp], K = (dy, dx, ph, pw, ci) -------
    w_r = conv_weight.astype(jnp.float32).reshape(cout, cin, 2, 2, 2, 2)  # co,ci,dy,ph,dx,pw
    w_t = jnp.transpose(w_r, (2, 4, 3, 5, 1, 0)).reshape(4 * c4, cout)
    w_mat = jnp.pad(w_t, ((0, 0), (0, coutp - cout))).astype(jnp.bfloat16)

    gamma_p = jnp.pad(gamma.astype(jnp.float32), (0, coutp - cout))
    beta_p = jnp.pad(beta.astype(jnp.float32), (0, coutp - cout))

    # ---- pass 1: conv + per-core partial BN stats ------------------------------
    tr = _pick_row_tile(noh, ow, row_tile_target)
    noh_tiles = noh // tr
    ncore = 2 if (noh_tiles % 2 == 0 and noh_tiles >= 2) else 1
    inner = noh_tiles // ncore

    y_flat, partials = pl.pallas_call(
        _conv_stats_kernel,
        out_shape=(
            jax.ShapeDtypeStruct((m, coutp), jnp.bfloat16),
            jax.ShapeDtypeStruct((ncore, 2, coutp), jnp.float32),
        ),
        grid_spec=pltpu.PrefetchScalarGridSpec(
            num_scalar_prefetch=0,
            grid=(ncore, inner),
            in_specs=[
                pl.BlockSpec((tr, ow + 1, c4), lambda p, i: (p * inner + i, 0, 0)),
                pl.BlockSpec((tr, ow + 1, c4), lambda p, i: (p * inner + i, 0, 0)),
                pl.BlockSpec((4 * c4, coutp), lambda p, i: (0, 0)),
            ],
            out_specs=[
                pl.BlockSpec((tr * ow, coutp), lambda p, i: (p * inner + i, 0)),
                pl.BlockSpec((1, 2, coutp), lambda p, i: (p, 0, 0)),
            ],
        ),
        compiler_params=pltpu.CompilerParams(
            dimension_semantics=("parallel", "arbitrary"),
            vmem_limit_bytes=vmem_limit,
        ),
    )(xs0, xs1, w_mat)

    # ---- fold BN into per-channel scale/shift (tiny, plain JAX) ----------------
    stats = jnp.sum(partials, axis=0)                       # [2, Coutp]
    cnt = jnp.float32(m)
    mean = stats[0] / cnt
    var = jnp.maximum(stats[1] / cnt - mean * mean, 0.0)    # biased var (PyTorch train)
    inv_std = jax.lax.rsqrt(var + BN_EPS)
    scale = (gamma_p * inv_std).reshape(1, coutp)
    shift = (beta_p - mean * gamma_p * inv_std).reshape(1, coutp)

    # ---- pass 2: normalize + LeakyReLU, written straight to NCHW ---------------
    ts = _pick_spatial_tile(ohw, spatial_tile_target)
    n_sp = ohw // ts
    y3 = y_flat.reshape(n, ohw, coutp)                      # free reshape

    out_nc = pl.pallas_call(
        _norm_act_nchw_kernel,
        out_shape=jax.ShapeDtypeStruct((n, cout, ohw), out_dtype),
        grid_spec=pltpu.PrefetchScalarGridSpec(
            num_scalar_prefetch=0,
            grid=(n, n_sp),
            in_specs=[
                pl.BlockSpec((None, ts, coutp), lambda b, s: (b, s, 0)),
                pl.BlockSpec((1, coutp), lambda b, s: (0, 0)),
                pl.BlockSpec((1, coutp), lambda b, s: (0, 0)),
            ],
            out_specs=pl.BlockSpec((None, cout, ts), lambda b, s: (b, 0, s)),
        ),
        compiler_params=pltpu.CompilerParams(
            dimension_semantics=("parallel", "parallel"),
            vmem_limit_bytes=vmem_limit,
        ),
    )(y3, scale, shift)

    return out_nc.reshape(n, cout, oh, ow)


# ----------------------------------------------------------------------------
# Pure-JAX reference for validation
# ----------------------------------------------------------------------------
def _reference(x, conv_weight, gamma, beta):
    y = jax.lax.conv_general_dilated(
        x.astype(jnp.float32), conv_weight.astype(jnp.float32),
        window_strides=(STRIDE, STRIDE), padding=((PAD, PAD), (PAD, PAD)),
        dimension_numbers=("NCHW", "OIHW", "NCHW"))
    mean = jnp.mean(y, axis=(0, 2, 3), keepdims=True)
    var = jnp.mean((y - mean) ** 2, axis=(0, 2, 3), keepdims=True)
    yhat = (y - mean) * jax.lax.rsqrt(var + BN_EPS)
    yhat = yhat * gamma.reshape(1, -1, 1, 1) + beta.reshape(1, -1, 1, 1)
    return jnp.where(yhat >= 0, yhat, LEAKY_SLOPE * yhat)


if __name__ == "__main__":
    # Small shapes consistent with EncBlock(in_chans=4, out_chans=8).
    N, CIN, COUT, H, W = 2, 4, 8, 16, 16

    key = jax.random.PRNGKey(0)
    kx, kw_, kg, kb = jax.random.split(key, 4)
    x = jax.random.normal(kx, (N, CIN, H, W), dtype=jnp.float32)
    fan_in = CIN * KH * KW
    conv_weight = jax.random.normal(kw_, (COUT, CIN, KH, KW), jnp.float32) / jnp.sqrt(fan_in)
    gamma = 1.0 + 0.1 * jax.random.normal(kg, (COUT,), jnp.float32)
    beta = 0.1 * jax.random.normal(kb, (COUT,), jnp.float32)

    # Small row-tile target at these demo shapes so the run exercises the
    # multi-step stats accumulation and the 2-way parallel partial split
    # (pass-1 grid = (2, 2)).  Production shapes would use the defaults.
    fn = jax.jit(lambda *a: enc_block(*a, row_tile_target=32))
    out = jax.block_until_ready(fn(x, conv_weight, gamma, beta))

    ref = _reference(x, conv_weight, gamma, beta)
    assert out.shape == (N, COUT, H // 2, W // 2), out.shape
    max_err = float(jnp.max(jnp.abs(out - ref)))
    assert max_err < 5e-2, max_err  # bf16 MXU inputs vs f32 reference

    print("KERNEL_OK")
</pallas_src>

<mosaic_0001>
module attributes {stable_mosaic.version = 11 : i64} {
  func.func @_conv_stats_kernel(%arg0: i32, %arg1: i32, %arg2: memref<4x9x16xbf16, #tpu.memory_space<vmem>>, %arg3: memref<4x9x16xbf16, #tpu.memory_space<vmem>>, %arg4: memref<64x128xbf16, #tpu.memory_space<vmem>>, %arg5: memref<32x128xbf16, #tpu.memory_space<vmem>>, %arg6: memref<1x2x128xf32, #tpu.memory_space<vmem>>) attributes {dimension_semantics = [#tpu.dimension_semantics<parallel>, #tpu.dimension_semantics<arbitrary>], iteration_bounds = array<i64: 2, 2>, scalar_prefetch = 0 : i64, scratch_operands = 0 : i64, tpu.core_type = #tpu.core_type<tc>, window_params = [{transform_indices = @transform_0, window_bounds = array<i64: 4, 9, 16>}, {transform_indices = @transform_1, window_bounds = array<i64: 4, 9, 16>}, {pipeline_mode = #tpu.pipeline_mode<synchronous>, transform_indices = @transform_2, window_bounds = array<i64: 64, 128>}, {transform_indices = @transform_3, window_bounds = array<i64: 32, 128>}, {transform_indices = @transform_4, window_bounds = array<i64: 1, 2, 128>}]} {
    %c0 = arith.constant 0 : index
    %c0_0 = arith.constant 0 : index
    %c0_1 = arith.constant 0 : index
    %0 = vector.load %arg2[%c0, %c0_0, %c0_1] : memref<4x9x16xbf16, #tpu.memory_space<vmem>>, vector<4x9x16xbf16>
    %c0_2 = arith.constant 0 : index
    %c0_3 = arith.constant 0 : index
    %c0_4 = arith.constant 0 : index
    %1 = vector.load %arg3[%c0_2, %c0_3, %c0_4] : memref<4x9x16xbf16, #tpu.memory_space<vmem>>, vector<4x9x16xbf16>
    %2 = vector.extract_strided_slice %0 {offsets = [0, 0, 0], sizes = [4, 8, 16], strides = [1, 1, 1]} : vector<4x9x16xbf16> to vector<4x8x16xbf16>
    %3 = vector.extract_strided_slice %0 {offsets = [0, 1, 0], sizes = [4, 8, 16], strides = [1, 1, 1]} : vector<4x9x16xbf16> to vector<4x8x16xbf16>
    %4 = vector.extract_strided_slice %1 {offsets = [0, 0, 0], sizes = [4, 8, 16], strides = [1, 1, 1]} : vector<4x9x16xbf16> to vector<4x8x16xbf16>
    %5 = vector.extract_strided_slice %1 {offsets = [0, 1, 0], sizes = [4, 8, 16], strides = [1, 1, 1]} : vector<4x9x16xbf16> to vector<4x8x16xbf16>
    %6 = tpu.concatenate %2, %3, %4, %5 in 2 : vector<4x8x16xbf16>, vector<4x8x16xbf16>, vector<4x8x16xbf16>, vector<4x8x16xbf16> -> vector<4x8x64xbf16>
    %7 = vector.shape_cast %6 : vector<4x8x64xbf16> to vector<32x64xbf16>
    %c0_5 = arith.constant 0 : index
    %c0_6 = arith.constant 0 : index
    %8 = vector.load %arg4[%c0_5, %c0_6] : memref<64x128xbf16, #tpu.memory_space<vmem>>, vector<64x128xbf16>
    %cst = arith.constant dense<0.000000e+00> : vector<32x128xf32>
    %9 = tpu.matmul %7, %8, %cst {dimension_numbers = #tpu.dot_dimension_numbers<[1], [0], [0], [1], [0, 0, 1, 1], [], []>} : vector<32x64xbf16>, vector<64x128xbf16>, vector<32x128xf32> -> vector<32x128xf32>
    %c0_i32 = arith.constant 0 : i32
    %10 = arith.cmpi eq, %arg1, %c0_i32 : i32
    %11 = arith.extui %10 : i1 to i32
    %c0_i32_7 = arith.constant 0 : i32
    %12 = arith.cmpi ne, %11, %c0_i32_7 : i32
    scf.if %12 {
      %cst_18 = arith.constant 0.000000e+00 : f32
      %25 = vector.broadcast %cst_18 : f32 to vector<1x2x128xf32>
      %c0_19 = arith.constant 0 : index
      %c0_20 = arith.constant 0 : index
      %c0_21 = arith.constant 0 : index
      %26 = vector.load %arg6[%c0_19, %c0_20, %c0_21] : memref<1x2x128xf32, #tpu.memory_space<vmem>>, vector<1x2x128xf32>
      tpu.vector_store %arg6[%c0_19, %c0_20, %c0_21], %25 {strides = array<i32>} : memref<1x2x128xf32, #tpu.memory_space<vmem>>, vector<1x2x128xf32>,
    } else {
    }
    %cst_8 = arith.constant dense<0.000000e+00> : vector<128xf32>
    %13 = vector.multi_reduction <add>, %9, %cst_8 [0] : vector<32x128xf32> to vector<128xf32>
    %14 = vector.shape_cast %13 : vector<128xf32> to vector<1x128xf32>
    %15 = arith.mulf %9, %9 : vector<32x128xf32>
    %cst_9 = arith.constant dense<0.000000e+00> : vector<128xf32>
    %16 = vector.multi_reduction <add>, %15, %cst_9 [0] : vector<32x128xf32> to vector<128xf32>
    %17 = vector.shape_cast %16 : vector<128xf32> to vector<1x128xf32>
    %c0_10 = arith.constant 0 : index
    %c0_11 = arith.constant 0 : index
    %c0_12 = arith.constant 0 : index
    %18 = vector.load %arg6[%c0_10, %c0_11, %c0_12] : memref<1x2x128xf32, #tpu.memory_space<vmem>>, vector<1x2x128xf32>
    %19 = tpu.concatenate %14, %17 in 0 : vector<1x128xf32>, vector<1x128xf32> -> vector<2x128xf32>
    %20 = vector.shape_cast %19 : vector<2x128xf32> to vector<1x2x128xf32>
    %21 = arith.addf %18, %20 : vector<1x2x128xf32>
    %c0_13 = arith.constant 0 : index
    %c0_14 = arith.constant 0 : index
    %c0_15 = arith.constant 0 : index
    %22 = vector.load %arg6[%c0_13, %c0_14, %c0_15] : memref<1x2x128xf32, #tpu.memory_space<vmem>>, vector<1x2x128xf32>
    tpu.vector_store %arg6[%c0_13, %c0_14, %c0_15], %21 {strides = array<i32>} : memref<1x2x128xf32, #tpu.memory_space<vmem>>, vector<1x2x128xf32>,
    %23 = arith.truncf %9 : vector<32x128xf32> to vector<32x128xbf16>
    %c0_16 = arith.constant 0 : index
    %c0_17 = arith.constant 0 : index
    %24 = vector.load %arg5[%c0_16, %c0_17] : memref<32x128xbf16, #tpu.memory_space<vmem>>, vector<32x128xbf16>
    tpu.vector_store %arg5[%c0_16, %c0_17], %23 {strides = array<i32>} : memref<32x128xbf16, #tpu.memory_space<vmem>>, vector<32x128xbf16>,
    return
  }
  func.func @transform_0(%arg0: i32, %arg1: i32) -> (i32, i32, i32) {
    %c2_i32 = arith.constant 2 : i32
    %0 = arith.muli %arg0, %c2_i32 : i32
    %1 = arith.addi %0, %arg1 : i32
    %c0_i32 = arith.constant 0 : i32
    %c0_i32_0 = arith.constant 0 : i32
    %c0_i32_1 = arith.constant 0 : i32
    return %1, %c0_i32, %c0_i32_0 : i32, i32, i32
  }
  func.func @transform_1(%arg0: i32, %arg1: i32) -> (i32, i32, i32) {
    %c2_i32 = arith.constant 2 : i32
    %0 = arith.muli %arg0, %c2_i32 : i32
    %1 = arith.addi %0, %arg1 : i32
    %c0_i32 = arith.constant 0 : i32
    %c0_i32_0 = arith.constant 0 : i32
    %c0_i32_1 = arith.constant 0 : i32
    return %1, %c0_i32, %c0_i32_0 : i32, i32, i32
  }
  func.func @transform_2(%arg0: i32, %arg1: i32) -> (i32, i32) {
    %c0_i32 = arith.constant 0 : i32
    %c0_i32_0 = arith.constant 0 : i32
    %c0_i32_1 = arith.constant 0 : i32
    return %c0_i32, %c0_i32_0 : i32, i32
  }
  func.func @transform_3(%arg0: i32, %arg1: i32) -> (i32, i32) {
    %c2_i32 = arith.constant 2 : i32
    %0 = arith.muli %arg0, %c2_i32 : i32
    %1 = arith.addi %0, %arg1 : i32
    %c0_i32 = arith.constant 0 : i32
    %c0_i32_0 = arith.constant 0 : i32
    return %1, %c0_i32 : i32, i32
  }
  func.func @transform_4(%arg0: i32, %arg1: i32) -> (i32, i32, i32) {
    %c0_i32 = arith.constant 0 : i32
    %c0_i32_0 = arith.constant 0 : i32
    %c0_i32_1 = arith.constant 0 : i32
    return %arg0, %c0_i32, %c0_i32_0 : i32, i32, i32
  }
}

module attributes {stable_mosaic.version = 11 : i64} {
  func.func @_norm_act_nchw_kernel(%arg0: i32, %arg1: i32, %arg2: memref<1x64x128xbf16, #tpu.memory_space<vmem>>, %arg3: memref<1x128xf32, #tpu.memory_space<vmem>>, %arg4: memref<1x128xf32, #tpu.memory_space<vmem>>, %arg5: memref<1x8x64xf32, #tpu.memory_space<vmem>>) attributes {dimension_semantics = [#tpu.dimension_semantics<parallel>, #tpu.dimension_semantics<parallel>], iteration_bounds = array<i64: 2, 1>, scalar_prefetch = 0 : i64, scratch_operands = 0 : i64, tpu.core_type = #tpu.core_type<tc>, window_params = [{transform_indices = @transform_0, window_bounds = array<i64: 1, 64, 128>}, {pipeline_mode = #tpu.pipeline_mode<synchronous>, transform_indices = @transform_1, window_bounds = array<i64: 1, 128>}, {pipeline_mode = #tpu.pipeline_mode<synchronous>, transform_indices = @transform_2, window_bounds = array<i64: 1, 128>}, {transform_indices = @transform_3, window_bounds = array<i64: 1, 8, 64>}]} {
    %c0 = arith.constant 0 : index
    %c0_0 = arith.constant 0 : index
    %c0_1 = arith.constant 0 : index
    %0 = vector.load %arg2[%c0, %c0_0, %c0_1] : memref<1x64x128xbf16, #tpu.memory_space<vmem>>, vector<1x64x128xbf16>
    %1 = vector.shape_cast %0 : vector<1x64x128xbf16> to vector<64x128xbf16>
    %2 = arith.extf %1 : vector<64x128xbf16> to vector<64x128xf32>
    %c0_2 = arith.constant 0 : index
    %c0_3 = arith.constant 0 : index
    %3 = vector.load %arg3[%c0_2, %c0_3] : memref<1x128xf32, #tpu.memory_space<vmem>>, vector<1x128xf32>
    %4 = vector.broadcast %3 : vector<1x128xf32> to vector<64x128xf32>
    %5 = arith.mulf %2, %4 : vector<64x128xf32>
    %c0_4 = arith.constant 0 : index
    %c0_5 = arith.constant 0 : index
    %6 = vector.load %arg4[%c0_4, %c0_5] : memref<1x128xf32, #tpu.memory_space<vmem>>, vector<1x128xf32>
    %7 = vector.broadcast %6 : vector<1x128xf32> to vector<64x128xf32>
    %8 = arith.addf %5, %7 : vector<64x128xf32>
    %cst = arith.constant 0.000000e+00 : f32
    %9 = vector.broadcast %cst : f32 to vector<64x128xf32>
    %10 = arith.cmpf oge, %8, %9 : vector<64x128xf32>
    %cst_6 = arith.constant 2.000000e-01 : f32
    %11 = vector.broadcast %cst_6 : f32 to vector<64x128xf32>
    %12 = arith.mulf %11, %8 : vector<64x128xf32>
    %13 = arith.select %10, %8, %12 : vector<64x128xi1>, vector<64x128xf32>
    %14 = tpu.transpose %13, [1, 0] : vector<64x128xf32> -> vector<128x64xf32>
    %15 = vector.extract_strided_slice %14 {offsets = [0, 0], sizes = [8, 64], strides = [1, 1]} : vector<128x64xf32> to vector<8x64xf32>
    %c0_7 = arith.constant 0 : index
    %c0_8 = arith.constant 0 : index
    %c0_9 = arith.constant 0 : index
    %16 = vector.load %arg5[%c0_7, %c0_8, %c0_9] : memref<1x8x64xf32, #tpu.memory_space<vmem>>, vector<1x8x64xf32>
    %17 = vector.shape_cast %16 : vector<1x8x64xf32> to vector<8x64xf32>
    %18 = vector.shape_cast %15 : vector<8x64xf32> to vector<1x8x64xf32>
    tpu.vector_store %arg5[%c0_7, %c0_8, %c0_9], %18 {strides = array<i32>} : memref<1x8x64xf32, #tpu.memory_space<vmem>>, vector<1x8x64xf32>,
    return
  }
  func.func @transform_0(%arg0: i32, %arg1: i32) -> (i32, i32, i32) {
    %c0_i32 = arith.constant 0 : i32
    %c0_i32_0 = arith.constant 0 : i32
    return %arg0, %arg1, %c0_i32 : i32, i32, i32
  }
  func.func @transform_1(%arg0: i32, %arg1: i32) -> (i32, i32) {
    %c0_i32 = arith.constant 0 : i32
    %c0_i32_0 = arith.constant 0 : i32
    %c0_i32_1 = arith.constant 0 : i32
    return %c0_i32, %c0_i32_0 : i32, i32
  }
  func.func @transform_2(%arg0: i32, %arg1: i32) -> (i32, i32) {
    %c0_i32 = arith.constant 0 : i32
    %c0_i32_0 = arith.constant 0 : i32
    %c0_i32_1 = arith.constant 0 : i32
    return %c0_i32, %c0_i32_0 : i32, i32
  }
  func.func @transform_3(%arg0: i32, %arg1: i32) -> (i32, i32, i32) {
    %c0_i32 = arith.constant 0 : i32
    %c0_i32_0 = arith.constant 0 : i32
    return %arg0, %c0_i32, %arg1 : i32, i32, i32
  }
}

</mosaic_0001>

<llo_original>
// kernel: _lambda_.3
$region0: #{_lambda_.3}
  #allocation0 [shape = 'u32[]', space=smem, size = 0x4, offset = 0x4, fixed_abs, tag = 'smem constant byte address 0x4 - core index']
  #allocation1 [shape = 'u32[144,128]{1,0:T(1,128)}', space=vmem, size = 0x12000, scoped, tag = 'internal scratch']
  %s0 = inlined_call_operand.vmem [shape: bf16[2,64,128], index: 0, kind: input, shape index: {}]
  %s1 = inlined_call_operand.vmem [shape: f32[1,128], index: 1, kind: input, shape index: {}]
  %s2 = inlined_call_operand.vmem [shape: f32[1,128], index: 2, kind: input, shape index: {}]
  %s3 = inlined_call_operand.vmem [shape: f32[2,8,64], index: 3, kind: output, shape index: {}]
  %s4 = sld [smem:[#allocation0]]
  $region45: #{_lambda_.3} parent=0
    _
  %s6 = ssub.s32 1, %s4
  %s7 = scalar_select 0, %s6, %s4
  loop: start=0, step=1, limit=4
  $region2: #{_lambda_.3} parent=0 // loop_pre_header
    _
  $region3: #{_lambda_.3} parent=0 // loop_header
    %s9 = sphi 0, %s13
    %p10 = scmp.ge.s32.totalorder %s9, 4
    %s16 = sphi 0, %s28
    %s17 = sphi 0, %s24
    %s18 = sphi 0, %s16
    %s19 = sphi 0, %s17
    %s20 = sphi 0, %s18
    %s21 = sphi 0, %s19
    %s33 = sphi 0, %s35
    %s36 = sphi 0, %s33
    %s37 = sphi 0, %s36
    %s53 = sphi 0, %s37
    %s57 = sphi 0, %s57
    %s59 = sphi 0, %s57
    %s60 = sphi 0, %s59
    %s74 = sphi 0, %s60
    %s78 = sphi 0, %s78
    %s80 = sphi 0, %s78
    %s81 = sphi 0, %s80
    %s95 = sphi 0, %s81
    %s103 = sphi 0, %s105
    %s106 = sphi 0, %s103
    %s107 = sphi 0, %s106
    %s123 = sphi 0, %s107
  $region4: #{_lambda_.3} parent=0 // loop_header_branch
    %12 = sbr.rel (%p10) target = $region8
  $region5: #{_lambda_.3} parent=0 // loop_body
    %s14 = ssub.s32 %s9, 1
    %s15 = ssub.s32 %s9, 2
    %s22 = sadd.s32 1, %s17
    %p23 = scmp.ge.s32.totalorder %s22, 1
    %s24 = scalar_select %p23, 0, %s22
    %s25 = sadd.s32 1, %s16
    %s26 = scalar_select %p23, %s25, %s16
    %p27 = scmp.ge.s32.totalorder %s26, 2
    %s28 = scalar_select %p27, 0, %s26
    %s29 = ssub.s32 %s16, %s28
    %s30 = ssub.s32 %s17, %s24
    %s31 = sor.u32 %s29, %s30
    %p32 = scmp.eq.s32.totalorder %s31, 0
    %s34 = sadd.s32 %s33, 1
    %s35 = scalar_select %p32, %s33, %s34
    %p38 = pneg %p32
    %p39 = scmp.eq.s32.totalorder %s9, 1
    %p40 = por %p38, %p39
    %p41 = scmp.ne.s32.totalorder %s33, %s36
    %p42 = scmp.eq.s32.totalorder %s9, 0
    %p43 = por %p41, %p42
    %p44 = scmp.ne.s32.totalorder %s33, %s36
    %p45 = scmp.eq.s32.totalorder %s14, 1
    %p46 = por %p44, %p45
    %p47 = scmp.ne.s32.totalorder %s36, %s37
    %p48 = scmp.eq.s32.totalorder %s14, 0
    %p49 = por %p47, %p48
    %p50 = scmp.ne.s32.totalorder %s36, %s37
    %p51 = scmp.eq.s32.totalorder %s15, 1
    %p52 = por %p50, %p51
    %p54 = scmp.ne.s32.totalorder %s37, %s53
    %p55 = scmp.eq.s32.totalorder %s15, 0
    %p56 = por %p54, %p55
    %s58 = sadd.s32 %s57, 1
    %p61 = scmp.eq.s32.totalorder %s9, 1
    %p62 = scmp.ne.s32.totalorder %s57, %s59
    %p63 = scmp.eq.s32.totalorder %s9, 0
    %p64 = por %p62, %p63
    %p65 = scmp.ne.s32.totalorder %s57, %s59
    %p66 = scmp.eq.s32.totalorder %s14, 1
    %p67 = por %p65, %p66
    %p68 = scmp.ne.s32.totalorder %s59, %s60
    %p69 = scmp.eq.s32.totalorder %s14, 0
    %p70 = por %p68, %p69
    %p71 = scmp.ne.s32.totalorder %s59, %s60
    %p72 = scmp.eq.s32.totalorder %s15, 1
    %p73 = por %p71, %p72
    %p75 = scmp.ne.s32.totalorder %s60, %s74
    %p76 = scmp.eq.s32.totalorder %s15, 0
    %p77 = por %p75, %p76
    %s79 = sadd.s32 %s78, 1
    %p82 = scmp.eq.s32.totalorder %s9, 1
    %p83 = scmp.ne.s32.totalorder %s78, %s80
    %p84 = scmp.eq.s32.totalorder %s9, 0
    %p85 = por %p83, %p84
    %p86 = scmp.ne.s32.totalorder %s78, %s80
    %p87 = scmp.eq.s32.totalorder %s14, 1
    %p88 = por %p86, %p87
    %p89 = scmp.ne.s32.totalorder %s80, %s81
    %p90 = scmp.eq.s32.totalorder %s14, 0
    %p91 = por %p89, %p90
    %p92 = scmp.ne.s32.totalorder %s80, %s81
    %p93 = scmp.eq.s32.totalorder %s15, 1
    %p94 = por %p92, %p93
    %p96 = scmp.ne.s32.totalorder %s81, %s95
    %p97 = scmp.eq.s32.totalorder %s15, 0
    %p98 = por %p96, %p97
    %s99 = ssub.s32 %s16, %s28
    %s100 = ssub.s32 %s17, %s24
    %s101 = sor.u32 %s99, %s100
    %p102 = scmp.eq.s32.totalorder %s101, 0
    %s104 = sadd.s32 %s103, 1
    %s105 = scalar_select %p102, %s103, %s104
    %p108 = pneg %p102
    %p109 = scmp.eq.s32.totalorder %s9, 1
    %p110 = por %p108, %p109
    %p111 = scmp.ne.s32.totalorder %s103, %s106
    %p112 = scmp.eq.s32.totalorder %s9, 0
    %p113 = por %p111, %p112
    %p114 = scmp.ne.s32.totalorder %s103, %s106
    %p115 = scmp.eq.s32.totalorder %s14, 1
    %p116 = por %p114, %p115
    %p117 = scmp.ne.s32.totalorder %s106, %s107
    %p118 = scmp.eq.s32.totalorder %s14, 0
    %p119 = por %p117, %p118
    %p120 = scmp.ne.s32.totalorder %s106, %s107
    %p121 = scmp.eq.s32.totalorder %s15, 1
    %p122 = por %p120, %p121
    %p124 = scmp.ne.s32.totalorder %s107, %s123
    %p125 = scmp.eq.s32.totalorder %s15, 0
    %p126 = por %p124, %p125
    %p127 = scmp.le.s32.totalorder 1, %s9
    %p128 = scmp.lt.s32.totalorder %s9, 3
    %p129 = pnand %p127, %p128
    %p130 = pneg %p129
    // Predicated region
    $region9: #{_lambda_.3} parent=5 // pred_check
      _
    $region10: #{_lambda_.3} parent=5 // pred_check_branch
      %132 = sbr.rel (%p129) target = $region12
    $region11: #{_lambda_.3} parent=5 // pred_region
      %s133 = ssub.s32 %s9, 1
      // Predicated region
      $region13: #{_lambda_.3} parent=11 // pred_check
        %p134 = pneg %p70
      $region14: #{_lambda_.3} parent=11 // pred_check_branch
        %136 = sbr.rel (%p134) target = $region16
      $region15: #{_lambda_.3} parent=11 // pred_region
        _
      $region16: #{_lambda_.3} parent=11 // pred_fallthru
        _
      // Predicated region
      $region17: #{_lambda_.3} parent=11 // pred_check
        %p137 = pneg %p91
      $region18: #{_lambda_.3} parent=11 // pred_check_branch
        %139 = sbr.rel (%p137) target = $region20
      $region19: #{_lambda_.3} parent=11 // pred_region
        _
      $region20: #{_lambda_.3} parent=11 // pred_fallthru
        _
    $region12: #{_lambda_.3} parent=5 // pred_fallthru
      _
    %p140 = scmp.lt.s32.totalorder %s9, 2
    // Predicated region
    $region21: #{_lambda_.3} parent=5 // pred_check
      %p141 = pneg %p140
    $region22: #{_lambda_.3} parent=5 // pred_check_branch
      %143 = sbr.rel (%p141) target = $region24
    $region23: #{_lambda_.3} parent=5 // pred_region
      // Predicated region
      $region25: #{_lambda_.3} parent=23 // pred_check
        %p144 = pneg %p43
      $region26: #{_lambda_.3} parent=23 // pred_check_branch
        %146 = sbr.rel (%p144) target = $region28
      $region27: #{_lambda_.3} parent=23 // pred_region
        %s147 = smul.u32 8, %s17
        %p148 = scmp.lt.s32.totalorder %s16, 1
        %s149 = scalar_select %p148, %s16, 1
        %p150 = scmp.lt.s32.totalorder %s147, 7
        %s151 = scalar_select %p150, %s147, 7
        %s152 = smul.addr %s149, 8
        %s153 = sadd.s32 %s151, %s152
        %s154 = smul.addr %s153, 4
        %s155 = scalar_lea.vmem %s0, %s154
        %s156 = smul.u32 8, %s17
      $region28: #{_lambda_.3} parent=23 // pred_fallthru
        _
    $region24: #{_lambda_.3} parent=5 // pred_fallthru
      _
    %p157 = scmp.le.s32.totalorder 1, %s9
    %p158 = scmp.lt.s32.totalorder %s9, 3
    %p159 = pnand %p157, %p158
    %p160 = pneg %p159
    // Predicated region
    $region29: #{_lambda_.3} parent=5 // pred_check
      _
    $region30: #{_lambda_.3} parent=5 // pred_check_branch
      %162 = sbr.rel (%p159) target = $region32
    $region31: #{_lambda_.3} parent=5 // pred_region
      %s163 = ssub.s32 %s9, 1
      %s164 = smul.u32 8, %s19
      %p165 = scmp.lt.s32.totalorder %s18, 1
      %s166 = scalar_select %p165, %s18, 1
      %p167 = scmp.lt.s32.totalorder %s164, 7
      %s168 = scalar_select %p167, %s164, 7
      %s169 = smul.addr %s166, 8
      %s170 = sadd.s32 %s168, %s169
      %s171 = smul.addr %s170, 4
      %s172 = scalar_lea.vmem %s0, %s171
      %p173 = pneg %p49
      %p174 = pneg %p46
      %p175 = pneg %p70
      %p176 = pneg %p67
      %p177 = pneg %p91
      %p178 = pneg %p88
      %p179 = pneg %p119
      %p180 = pneg %p116
      %p181 = scmp.lt.s32.totalorder %s18, 1
      %s182 = scalar_select %p181, %s18, 1
      %p183 = scmp.lt.s32.totalorder %s19, 0
      %s184 = scalar_select %p183, %s19, 0
      %s185 = sadd.s32 %s184, %s182
      %s186 = smul.addr %s185, 8
      %s187 = scalar_lea.vmem %s3, %s186
      %s188 = smul.u32 8, %s19
      %p189 = scmp.lt.s32.totalorder %s18, 1
      %s190 = scalar_select %p189, %s18, 1
      %p191 = scmp.lt.s32.totalorder %s188, 7
      %s192 = scalar_select %p191, %s188, 7
      %s193 = smul.addr %s190, 8
      %s194 = sadd.s32 %s192, %s193
      %s195 = smul.addr %s194, 4
      %s196 = scalar_lea.vmem %s0, %s195
      %s197 = smul.u32 8, %s19
      %p198 = scmp.lt.s32.totalorder %s18, 1
      %s199 = scalar_select %p198, %s18, 1
      %p200 = scmp.lt.s32.totalorder %s19, 0
      %s201 = scalar_select %p200, %s19, 0
      %s202 = sadd.s32 %s201, %s199
      %s203 = smul.addr %s202, 8
      %s204 = scalar_lea.vmem %s3, %s203
      %v205 = vld [vmem:[%s196] sm:$0xf]
      %v206 = vld [vmem:[%s196 + $0x4] sm:$0xf]
      %v207 = vld [vmem:[%s196 + $0x8] sm:$0xf]
      %v208 = vld [vmem:[%s196 + $0xc] sm:$0xf]
      %v209 = vld [vmem:[%s196 + $0x10] sm:$0xf]
      %v210 = vld [vmem:[%s196 + $0x14] sm:$0xf]
      %v211 = vld [vmem:[%s196 + $0x18] sm:$0xf]
      %v212 = vld [vmem:[%s196 + $0x1c] sm:$0xf]
      %v213 = vunpack.c.l.bf16 %v205
      %v214 = vunpack.c.l.bf16 %v206
      %v215 = vunpack.c.l.bf16 %v207
      %v216 = vunpack.c.l.bf16 %v208
      %v217 = vunpack.c.l.bf16 %v209
      %v218 = vunpack.c.l.bf16 %v210
      %v219 = vunpack.c.l.bf16 %v211
      %v220 = vunpack.c.l.bf16 %v212
      %v221 = vld [vmem:[%s1] sm:$0x1]
      %v223 = vlaneseq
      %v224 = vshrl.u32 %v223, 7
      %v225 = vsub.s32 0, %v224
      %v226 = vrot.slane %v221, %v225
      %v228 = vmul.f32 %v213, %v226
      %v229 = vmul.f32 %v214, %v226
      %v230 = vmul.f32 %v215, %v226
      %v231 = vmul.f32 %v216, %v226
      %v232 = vmul.f32 %v217, %v226
      %v233 = vmul.f32 %v218, %v226
      %v234 = vmul.f32 %v219, %v226
      %v235 = vmul.f32 %v220, %v226
      %v236 = vld [vmem:[%s2] sm:$0x1]
      %v238 = vlaneseq
      %v239 = vshrl.u32 %v238, 7
      %v240 = vsub.s32 0, %v239
      %v241 = vrot.slane %v236, %v240
      %v243 = vadd.f32 %v228, %v241
      %v244 = vadd.f32 %v229, %v241
      %v245 = vadd.f32 %v230, %v241
      %v246 = vadd.f32 %v231, %v241
      %v247 = vadd.f32 %v232, %v241
      %v248 = vadd.f32 %v233, %v241
      %v249 = vadd.f32 %v234, %v241
      %v250 = vadd.f32 %v235, %v241
      %vm251 = vcmp.ge.f32.partialorder %v243, 0.0
      %vm252 = vcmp.ge.f32.partialorder %v244, 0.0
      %vm253 = vcmp.ge.f32.partialorder %v245, 0.0
      %vm254 = vcmp.ge.f32.partialorder %v246, 0.0
      %vm255 = vcmp.ge.f32.partialorder %v247, 0.0
      %vm256 = vcmp.ge.f32.partialorder %v248, 0.0
      %vm257 = vcmp.ge.f32.partialorder %v249, 0.0
      %vm258 = vcmp.ge.f32.partialorder %v250, 0.0
      %v259 = vmul.f32 %v243, 0.2
      %v260 = vmul.f32 %v244, 0.2
      %v261 = vmul.f32 %v245, 0.2
      %v262 = vmul.f32 %v246, 0.2
      %v263 = vmul.f32 %v247, 0.2
      %v264 = vmul.f32 %v248, 0.2
      %v265 = vmul.f32 %v249, 0.2
      %v266 = vmul.f32 %v250, 0.2
      %v267 = vsel %vm251, %v243, %v259
      %v268 = vsel %vm252, %v244, %v260
      %v269 = vsel %vm253, %v245, %v261
      %v270 = vsel %vm254, %v246, %v262
      %v271 = vsel %vm255, %v247, %v263
      %v272 = vsel %vm256, %v248, %v264
      %v273 = vsel %vm257, %v249, %v265
      %v274 = vsel %vm258, %v250, %v266
      %275 = vxpose.xlu0.b32.start [1/16] %v267, 128
      %276 = vxpose.xlu0.b32.cont [2/16] %v268, 128
      %277 = vxpose.xlu0.b32.cont [3/16] %v269, 128
      %278 = vxpose.xlu0.b32.cont [4/16] %v270, 128
      %279 = vxpose.xlu0.b32.cont [5/16] %v271, 128
      %280 = vxpose.xlu0.b32.cont [6/16] %v272, 128
      %281 = vxpose.xlu0.b32.cont [7/16] %v273, 128
      %282 = vxpose.xlu0.b32.cont [8/16] %v274, 128
      %283 = vxpose.xlu0.b32.cont [9/16] 0.0, 128
      %284 = vxpose.xlu0.b32.cont [10/16] 0.0, 128
      %285 = vxpose.xlu0.b32.cont [11/16] 0.0, 128
      %286 = vxpose.xlu0.b32.cont [12/16] 0.0, 128
      %287 = vxpose.xlu0.b32.cont [13/16] 0.0, 128
      %288 = vxpose.xlu0.b32.cont [14/16] 0.0, 128
      %289 = vxpose.xlu0.b32.cont [15/16] 0.0, 128
      %290 = vxpose.xlu0.b32.end [16/16] 0.0, 128
      %v291 = vpop.trf.xlu0
      %v292 = vpop.trf.xlu0
      %v293 = vpop.trf.xlu0
      %v294 = vpop.trf.xlu0
      %v295 = vpop.trf.xlu0
      %v296 = vpop.trf.xlu0
      %v297 = vpop.trf.xlu0
      %v298 = vpop.trf.xlu0
      %v299 = vpop.trf.xlu0
      %v300 = vpop.trf.xlu0
      %v301 = vpop.trf.xlu0
      %v302 = vpop.trf.xlu0
      %v303 = vpop.trf.xlu0
      %v304 = vpop.trf.xlu0
      %v305 = vpop.trf.xlu0
      %v306 = vpop.trf.xlu0
      %vm307 = vcmask 523264
      %308 = vst.msk [vmem:[%s204] sm:$0xff] %vm307, %v291
      %p309 = scmp.lt.s32.totalorder %s18, 1
      %s310 = scalar_select %p309, %s18, 1
      %p311 = scmp.lt.s32.totalorder %s19, 0
      %s312 = scalar_select %p311, %s19, 0
      %s313 = sadd.s32 %s312, %s310
      %s314 = smul.addr %s313, 8
      %s315 = scalar_lea.vmem %s3, %s314
      // Predicated region
      $region33: #{_lambda_.3} parent=31 // pred_check
        %p316 = pneg %p116
      $region34: #{_lambda_.3} parent=31 // pred_check_branch
        %318 = sbr.rel (%p316) target = $region36
      $region35: #{_lambda_.3} parent=31 // pred_region
        _
      $region36: #{_lambda_.3} parent=31 // pred_fallthru
        _
    $region32: #{_lambda_.3} parent=5 // pred_fallthru
      _
    %p319 = scmp.le.s32.totalorder 2, %s9
    // Predicated region
    $region37: #{_lambda_.3} parent=5 // pred_check
      %p320 = pneg %p319
    $region38: #{_lambda_.3} parent=5 // pred_check_branch
      %322 = sbr.rel (%p320) target = $region40
    $region39: #{_lambda_.3} parent=5 // pred_region
      %s323 = ssub.s32 %s9, 2
      // Predicated region
      $region41: #{_lambda_.3} parent=39 // pred_check
        %p324 = pneg %p122
      $region42: #{_lambda_.3} parent=39 // pred_check_branch
        %326 = sbr.rel (%p324) target = $region44
      $region43: #{_lambda_.3} parent=39 // pred_region
        %p327 = scmp.lt.s32.totalorder %s20, 1
        %s328 = scalar_select %p327, %s20, 1
        %p329 = scmp.lt.s32.totalorder %s21, 0
        %s330 = scalar_select %p329, %s21, 0
        %s331 = sadd.s32 %s330, %s328
        %s332 = smul.addr %s331, 8
        %s333 = scalar_lea.vmem %s3, %s332
      $region44: #{_lambda_.3} parent=39 // pred_fallthru
        _
    $region40: #{_lambda_.3} parent=5 // pred_fallthru
      _
  $region6: #{_lambda_.3} parent=0 // loop_footer
    %s13 = sadd.s32 1, %s9
  $region7: #{_lambda_.3} parent=0 // loop_footer_branch
    %8 = sbr.rel target = $region3
  $region8: #{_lambda_.3} parent=0 // loop_exit
    _

// kernel: _lambda_.2
$region0: #{_lambda_.2}
  #allocation0 [shape = 'u32[]', space=smem, size = 0x4, offset = 0x4, fixed_abs, tag = 'smem constant byte address 0x4 - core index']
  #allocation1 [shape = 'u32[144,128]{1,0:T(1,128)}', space=vmem, size = 0x12000, scoped, tag = 'internal scratch']
  %s0 = inlined_call_operand.vmem [shape: bf16[16,9,16], index: 0, kind: input, shape index: {}]
  %s1 = inlined_call_operand.vmem [shape: bf16[16,9,16], index: 1, kind: input, shape index: {}]
  %s2 = inlined_call_operand.vmem [shape: bf16[64,128], index: 2, kind: input, shape index: {}]
  %s3 = inlined_call_operand.vmem [shape: bf16[128,128], index: 3, kind: output, shape index: {0}]
  %s4 = inlined_call_operand.vmem [shape: f32[2,2,128], index: 4, kind: output, shape index: {1}]
  %5 = xla_tuple %s3, %s4
  %s6 = sld [smem:[#allocation0]]
  $region57: #{_lambda_.2} parent=0
    _
  %s8 = ssub.s32 1, %s6
  %s9 = scalar_select 0, %s8, %s6
  loop: start=0, step=1, limit=6
  $region2: #{_lambda_.2} parent=0 // loop_pre_header
    _
  $region3: #{_lambda_.2} parent=0 // loop_header
    %s11 = sphi 0, %s15
    %p12 = scmp.ge.s32.totalorder %s11, 6
    %s18 = sphi 0, %s30
    %s19 = sphi 0, %s26
    %s20 = sphi 0, %s18
    %s21 = sphi 0, %s19
    %s22 = sphi 0, %s20
    %s23 = sphi 0, %s21
    %s37 = sphi 0, %s39
    %s40 = sphi 0, %s37
    %s41 = sphi 0, %s40
    %s57 = sphi 0, %s41
    %s67 = sphi 0, %s69
    %s70 = sphi 0, %s67
    %s71 = sphi 0, %s70
    %s87 = sphi 0, %s71
    %s91 = sphi 0, %s91
    %s93 = sphi 0, %s91
    %s94 = sphi 0, %s93
    %s108 = sphi 0, %s94
    %s118 = sphi 0, %s120
    %s121 = sphi 0, %s118
    %s122 = sphi 0, %s121
    %s138 = sphi 0, %s122
    %s144 = sphi 0, %s146
    %s147 = sphi 0, %s144
    %s148 = sphi 0, %s147
    %s164 = sphi 0, %s148
  $region4: #{_lambda_.2} parent=0 // loop_header_branch
    %14 = sbr.rel (%p12) target = $region8
  $region5: #{_lambda_.2} parent=0 // loop_body
    %s16 = ssub.s32 %s11, 1
    %s17 = ssub.s32 %s11, 2
    %s24 = sadd.s32 1, %s19
    %p25 = scmp.ge.s32.totalorder %s24, 2
    %s26 = scalar_select %p25, 0, %s24
    %s27 = sadd.s32 1, %s18
    %s28 = scalar_select %p25, %s27, %s18
    %p29 = scmp.ge.s32.totalorder %s28, 2
    %s30 = scalar_select %p29, 0, %s28
    %s31 = smul.u32 %s18, 2
    %s32 = sadd.s32 %s31, %s19
    %s33 = smul.u32 %s30, 2
    %s34 = sadd.s32 %s33, %s26
    %s35 = ssub.s32 %s32, %s34
    %p36 = scmp.eq.s32.totalorder %s35, 0
    %s38 = sadd.s32 %s37, 1
    %s39 = scalar_select %p36, %s37, %s38
    %p42 = pneg %p36
    %p43 = scmp.eq.s32.totalorder %s11, 3
    %p44 = por %p42, %p43
    %p45 = scmp.ne.s32.totalorder %s37, %s40
    %p46 = scmp.eq.s32.totalorder %s11, 0
    %p47 = por %p45, %p46
    %p48 = scmp.ne.s32.totalorder %s37, %s40
    %p49 = scmp.eq.s32.totalorder %s16, 3
    %p50 = por %p48, %p49
    %p51 = scmp.ne.s32.totalorder %s40, %s41
    %p52 = scmp.eq.s32.totalorder %s16, 0
    %p53 = por %p51, %p52
    %p54 = scmp.ne.s32.totalorder %s40, %s41
    %p55 = scmp.eq.s32.totalorder %s17, 3
    %p56 = por %p54, %p55
    %p58 = scmp.ne.s32.totalorder %s41, %s57
    %p59 = scmp.eq.s32.totalorder %s17, 0
    %p60 = por %p58, %p59
    %s61 = smul.u32 %s18, 2
    %s62 = sadd.s32 %s61, %s19
    %s63 = smul.u32 %s30, 2
    %s64 = sadd.s32 %s63, %s26
    %s65 = ssub.s32 %s62, %s64
    %p66 = scmp.eq.s32.totalorder %s65, 0
    %s68 = sadd.s32 %s67, 1
    %s69 = scalar_select %p66, %s67, %s68
    %p72 = pneg %p66
    %p73 = scmp.eq.s32.totalorder %s11, 3
    %p74 = por %p72, %p73
    %p75 = scmp.ne.s32.totalorder %s67, %s70
    %p76 = scmp.eq.s32.totalorder %s11, 0
    %p77 = por %p75, %p76
    %p78 = scmp.ne.s32.totalorder %s67, %s70
    %p79 = scmp.eq.s32.totalorder %s16, 3
    %p80 = por %p78, %p79
    %p81 = scmp.ne.s32.totalorder %s70, %s71
    %p82 = scmp.eq.s32.totalorder %s16, 0
    %p83 = por %p81, %p82
    %p84 = scmp.ne.s32.totalorder %s70, %s71
    %p85 = scmp.eq.s32.totalorder %s17, 3
    %p86 = por %p84, %p85
    %p88 = scmp.ne.s32.totalorder %s71, %s87
    %p89 = scmp.eq.s32.totalorder %s17, 0
    %p90 = por %p88, %p89
    %s92 = sadd.s32 %s91, 1
    %p95 = scmp.eq.s32.totalorder %s11, 3
    %p96 = scmp.ne.s32.totalorder %s91, %s93
    %p97 = scmp.eq.s32.totalorder %s11, 0
    %p98 = por %p96, %p97
    %p99 = scmp.ne.s32.totalorder %s91, %s93
    %p100 = scmp.eq.s32.totalorder %s16, 3
    %p101 = por %p99, %p100
    %p102 = scmp.ne.s32.totalorder %s93, %s94
    %p103 = scmp.eq.s32.totalorder %s16, 0
    %p104 = por %p102, %p103
    %p105 = scmp.ne.s32.totalorder %s93, %s94
    %p106 = scmp.eq.s32.totalorder %s17, 3
    %p107 = por %p105, %p106
    %p109 = scmp.ne.s32.totalorder %s94, %s108
    %p110 = scmp.eq.s32.totalorder %s17, 0
    %p111 = por %p109, %p110
    %s112 = smul.u32 %s18, 2
    %s113 = sadd.s32 %s112, %s19
    %s114 = smul.u32 %s30, 2
    %s115 = sadd.s32 %s114, %s26
    %s116 = ssub.s32 %s113, %s115
    %p117 = scmp.eq.s32.totalorder %s116, 0
    %s119 = sadd.s32 %s118, 1
    %s120 = scalar_select %p117, %s118, %s119
    %p123 = pneg %p117
    %p124 = scmp.eq.s32.totalorder %s11, 3
    %p125 = por %p123, %p124
    %p126 = scmp.ne.s32.totalorder %s118, %s121
    %p127 = scmp.eq.s32.totalorder %s11, 0
    %p128 = por %p126, %p127
    %p129 = scmp.ne.s32.totalorder %s118, %s121
    %p130 = scmp.eq.s32.totalorder %s16, 3
    %p131 = por %p129, %p130
    %p132 = scmp.ne.s32.totalorder %s121, %s122
    %p133 = scmp.eq.s32.totalorder %s16, 0
    %p134 = por %p132, %p133
    %p135 = scmp.ne.s32.totalorder %s121, %s122
    %p136 = scmp.eq.s32.totalorder %s17, 3
    %p137 = por %p135, %p136
    %p139 = scmp.ne.s32.totalorder %s122, %s138
    %p140 = scmp.eq.s32.totalorder %s17, 0
    %p141 = por %p139, %p140
    %s142 = ssub.s32 %s18, %s30
    %p143 = scmp.eq.s32.totalorder %s142, 0
    %s145 = sadd.s32 %s144, 1
    %s146 = scalar_select %p143, %s144, %s145
    %p149 = pneg %p143
    %p150 = scmp.eq.s32.totalorder %s11, 3
    %p151 = por %p149, %p150
    %p152 = scmp.ne.s32.totalorder %s144, %s147
    %p153 = scmp.eq.s32.totalorder %s11, 0
    %p154 = por %p152, %p153
    %p155 = scmp.ne.s32.totalorder %s144, %s147
    %p156 = scmp.eq.s32.totalorder %s16, 3
    %p157 = por %p155, %p156
    %p158 = scmp.ne.s32.totalorder %s147, %s148
    %p159 = scmp.eq.s32.totalorder %s16, 0
    %p160 = por %p158, %p159
    %p161 = scmp.ne.s32.totalorder %s147, %s148
    %p162 = scmp.eq.s32.totalorder %s17, 3
    %p163 = por %p161, %p162
    %p165 = scmp.ne.s32.totalorder %s148, %s164
    %p166 = scmp.eq.s32.totalorder %s17, 0
    %p167 = por %p165, %p166
    %p168 = scmp.le.s32.totalorder 1, %s11
    %p169 = scmp.lt.s32.totalorder %s11, 5
    %p170 = pnand %p168, %p169
    %p171 = pneg %p170
    // Predicated region
    $region9: #{_lambda_.2} parent=5 // pred_check
      _
    $region10: #{_lambda_.2} parent=5 // pred_check_branch
      %173 = sbr.rel (%p170) target = $region12
    $region11: #{_lambda_.2} parent=5 // pred_region
      %s174 = ssub.s32 %s11, 1
      // Predicated region
      $region13: #{_lambda_.2} parent=11 // pred_check
        %p175 = pneg %p104
      $region14: #{_lambda_.2} parent=11 // pred_check_branch
        %177 = sbr.rel (%p175) target = $region16
      $region15: #{_lambda_.2} parent=11 // pred_region
        _
      $region16: #{_lambda_.2} parent=11 // pred_fallthru
        _
    $region12: #{_lambda_.2} parent=5 // pred_fallthru
      _
    %p178 = scmp.lt.s32.totalorder %s11, 4
    // Predicated region
    $region17: #{_lambda_.2} parent=5 // pred_check
      %p179 = pneg %p178
    $region18: #{_lambda_.2} parent=5 // pred_check_branch
      %181 = sbr.rel (%p179) target = $region20
    $region19: #{_lambda_.2} parent=5 // pred_region
      // Predicated region
      $region21: #{_lambda_.2} parent=19 // pred_check
        %p182 = pneg %p47
      $region22: #{_lambda_.2} parent=19 // pred_check_branch
        %184 = sbr.rel (%p182) target = $region24
      $region23: #{_lambda_.2} parent=19 // pred_region
        %s185 = smul.u32 %s18, 2
        %s186 = sadd.s32 %s185, %s19
        %s187 = smul.u32 4, %s186
        %p188 = scmp.lt.s32.totalorder %s187, 15
        %s189 = scalar_select %p188, %s187, 15
        %s190 = smul.addr %s189, 2
        %s191 = smul.addr %s190, 4
        %s192 = scalar_lea.vmem %s0, %s191
        %s193 = smul.u32 %s18, 2
        %s194 = sadd.s32 %s193, %s19
        %s195 = smul.u32 4, %s194
      $region24: #{_lambda_.2} parent=19 // pred_fallthru
        _
      // Predicated region
      $region25: #{_lambda_.2} parent=19 // pred_check
        %p196 = pneg %p77
      $region26: #{_lambda_.2} parent=19 // pred_check_branch
        %198 = sbr.rel (%p196) target = $region28
      $region27: #{_lambda_.2} parent=19 // pred_region
        %s199 = smul.u32 %s18, 2
        %s200 = sadd.s32 %s199, %s19
        %s201 = smul.u32 4, %s200
        %p202 = scmp.lt.s32.totalorder %s201, 15
        %s203 = scalar_select %p202, %s201, 15
        %s204 = smul.addr %s203, 2
        %s205 = smul.addr %s204, 4
        %s206 = scalar_lea.vmem %s1, %s205
        %s207 = smul.u32 %s18, 2
        %s208 = sadd.s32 %s207, %s19
        %s209 = smul.u32 4, %s208
      $region28: #{_lambda_.2} parent=19 // pred_fallthru
        _
    $region20: #{_lambda_.2} parent=5 // pred_fallthru
      _
    %p210 = scmp.le.s32.totalorder 1, %s11
    %p211 = scmp.lt.s32.totalorder %s11, 5
    %p212 = pnand %p210, %p211
    %p213 = pneg %p212
    // Predicated region
    $region29: #{_lambda_.2} parent=5 // pred_check
      _
    $region30: #{_lambda_.2} parent=5 // pred_check_branch
      %215 = sbr.rel (%p212) target = $region32
    $region31: #{_lambda_.2} parent=5 // pred_region
      %s216 = ssub.s32 %s11, 1
      %s217 = smul.u32 %s20, 2
      %s218 = sadd.s32 %s217, %s21
      %s219 = smul.u32 4, %s218
      %p220 = scmp.lt.s32.totalorder %s219, 15
      %s221 = scalar_select %p220, %s219, 15
      %s222 = smul.addr %s221, 2
      %s223 = smul.addr %s222, 4
      %s224 = scalar_lea.vmem %s0, %s223
      %p225 = pneg %p53
      %p226 = pneg %p50
      %s227 = smul.u32 %s20, 2
      %s228 = sadd.s32 %s227, %s21
      %s229 = smul.u32 4, %s228
      %p230 = scmp.lt.s32.totalorder %s229, 15
      %s231 = scalar_select %p230, %s229, 15
      %s232 = smul.addr %s231, 2
      %s233 = smul.addr %s232, 4
      %s234 = scalar_lea.vmem %s1, %s233
      %p235 = pneg %p83
      %p236 = pneg %p80
      %p237 = pneg %p104
      %p238 = pneg %p101
      %p239 = pneg %p134
      %p240 = pneg %p131
      %s241 = smul.u32 %s20, 2
      %s242 = sadd.s32 %s241, %s21
      %s243 = smul.u32 4, %s242
      %p244 = scmp.lt.s32.totalorder %s243, 15
      %s245 = scalar_select %p244, %s243, 15
      %s246 = smul.addr %s245, 4
      %s247 = scalar_lea.vmem %s3, %s246
      %p248 = pneg %p160
      %p249 = pneg %p157
      %p250 = scmp.lt.s32.totalorder %s20, 1
      %s251 = scalar_select %p250, %s20, 1
      %s252 = smul.addr %s251, 2
      %s253 = scalar_lea.vmem %s4, %s252
      %s254 = smul.u32 %s20, 2
      %s255 = sadd.s32 %s254, %s21
      %s256 = smul.u32 4, %s255
      %p257 = scmp.lt.s32.totalorder %s256, 15
      %s258 = scalar_select %p257, %s256, 15
      %s259 = smul.addr %s258, 2
      %s260 = smul.addr %s259, 4
      %s261 = scalar_lea.vmem %s0, %s260
      %s262 = smul.u32 %s20, 2
      %s263 = sadd.s32 %s262, %s21
      %s264 = smul.u32 4, %s263
      %s265 = smul.u32 %s20, 2
      %s266 = sadd.s32 %s265, %s21
      %s267 = smul.u32 4, %s266
      %p268 = scmp.lt.s32.totalorder %s267, 15
      %s269 = scalar_select %p268, %s267, 15
      %s270 = smul.addr %s269, 2
      %s271 = smul.addr %s270, 4
      %s272 = scalar_lea.vmem %s1, %s271
      %s273 = smul.u32 %s20, 2
      %s274 = sadd.s32 %s273, %s21
      %s275 = smul.u32 4, %s274
      %s276 = smul.u32 %s20, 2
      %s277 = sadd.s32 %s276, %s21
      %s278 = smul.u32 4, %s277
      %p279 = scmp.lt.s32.totalorder %s278, 15
      %s280 = scalar_select %p279, %s278, 15
      %s281 = smul.addr %s280, 4
      %s282 = scalar_lea.vmem %s3, %s281
      %s283 = smul.u32 %s20, 2
      %s284 = sadd.s32 %s283, %s21
      %s285 = smul.u32 4, %s284
      %p286 = scmp.lt.s32.totalorder %s20, 1
      %s287 = scalar_select %p286, %s20, 1
      %s288 = smul.addr %s287, 2
      %s289 = scalar_lea.vmem %s4, %s288
      %v291 = vld [vmem:[%s261] sm:$0xf]
      %v292 = vld [vmem:[%s261 + $0x4] sm:$0x1]
      %v293 = vld [vmem:[%s261 + $0x8] sm:$0xf]
      %v294 = vld [vmem:[%s261 + $0xc] sm:$0x1]
      %v295 = vld [vmem:[%s261 + $0x10] sm:$0xf]
      %v296 = vld [vmem:[%s261 + $0x14] sm:$0x1]
      %v297 = vld [vmem:[%s261 + $0x18] sm:$0xf]
      %v298 = vld [vmem:[%s261 + $0x1c] sm:$0x1]
      %v299 = vld [vmem:[%s272] sm:$0xf]
      %v300 = vld [vmem:[%s272 + $0x4] sm:$0x1]
      %v301 = vld [vmem:[%s272 + $0x8] sm:$0xf]
      %v302 = vld [vmem:[%s272 + $0xc] sm:$0x1]
      %v303 = vld [vmem:[%s272 + $0x10] sm:$0xf]
      %v304 = vld [vmem:[%s272 + $0x14] sm:$0x1]
      %v305 = vld [vmem:[%s272 + $0x18] sm:$0xf]
      %v306 = vld [vmem:[%s272 + $0x1c] sm:$0x1]
      %v315 = vunpack.c.l.b16 %v291
      %v316 = vunpack.c.l.b16 %v292
      %v317 = vunpack.c.l.b16 %v293
      %v318 = vunpack.c.l.b16 %v294
      %v319 = vunpack.c.l.b16 %v295
      %v320 = vunpack.c.l.b16 %v296
      %v321 = vunpack.c.l.b16 %v297
      %v322 = vunpack.c.l.b16 %v298
      %v323 = vpack.c.b16 %v316, %v315
      %v324 = vpack.c.b16 %v318, %v317
      %v325 = vpack.c.b16 %v320, %v319
      %v326 = vpack.c.b16 %v322, %v321
      %v328 = vshrl.u32 %v323, 16
      %v330 = vshll.u32 %v323, 16
      %v332 = vrot.slane %v330, 1
      %v333 = vor.u32 %v328, %v332
      %v335 = vshrl.u32 %v324, 16
      %v337 = vshll.u32 %v324, 16
      %v339 = vrot.slane %v337, 1
      %v340 = vor.u32 %v335, %v339
      %v342 = vshrl.u32 %v325, 16
      %v344 = vshll.u32 %v325, 16
      %v346 = vrot.slane %v344, 1
      %v347 = vor.u32 %v342, %v346
      %v349 = vshrl.u32 %v326, 16
      %v351 = vshll.u32 %v326, 16
      %v353 = vrot.slane %v351, 1
      %v354 = vor.u32 %v349, %v353
      %355 = vrot.lane.b32.xlu0 %v333, 16
      %v356 = vpop.permute.xlu0 %355
      %357 = vrot.lane.b32.xlu0 %v340, 16
      %v358 = vpop.permute.xlu0 %357
      %359 = vrot.lane.b32.xlu0 %v347, 16
      %v360 = vpop.permute.xlu0 %359
      %361 = vrot.lane.b32.xlu0 %v354, 16
      %v362 = vpop.permute.xlu0 %361
      %v367 = vunpack.c.l.b16 %v299
      %v368 = vunpack.c.l.b16 %v301
      %v369 = vunpack.c.l.b16 %v303
      %v370 = vunpack.c.l.b16 %v305
      %v371 = vpack.c.b16 %v367, %v367
      %v372 = vpack.c.b16 %v368, %v368
      %v373 = vpack.c.b16 %v369, %v369
      %v374 = vpack.c.b16 %v370, %v370
      %375 = vrot.lane.b32.xlu0 %v371, 32
      %v376 = vpop.permute.xlu0 %375
      %377 = vrot.lane.b32.xlu0 %v372, 32
      %v378 = vpop.permute.xlu0 %377
      %379 = vrot.lane.b32.xlu0 %v373, 32
      %v380 = vpop.permute.xlu0 %379
      %381 = vrot.lane.b32.xlu0 %v374, 32
      %v382 = vpop.permute.xlu0 %381
      %v387 = vunpack.c.l.b16 %v300
      %v388 = vunpack.c.l.b16 %v302
      %v389 = vunpack.c.l.b16 %v304
      %v390 = vunpack.c.l.b16 %v306
      %v391 = vpack.c.b16 %v387, %v367
      %v392 = vpack.c.b16 %v388, %v368
      %v393 = vpack.c.b16 %v389, %v369
      %v394 = vpack.c.b16 %v390, %v370
      %v396 = vshrl.u32 %v391, 16
      %v398 = vshll.u32 %v391, 16
      %v400 = vrot.slane %v398, 1
      %v401 = vor.u32 %v396, %v400
      %v403 = vshrl.u32 %v392, 16
      %v405 = vshll.u32 %v392, 16
      %v407 = vrot.slane %v405, 1
      %v408 = vor.u32 %v403, %v407
      %v410 = vshrl.u32 %v393, 16
      %v412 = vshll.u32 %v393, 16
      %v414 = vrot.slane %v412, 1
      %v415 = vor.u32 %v410, %v414
      %v417 = vshrl.u32 %v394, 16
      %v419 = vshll.u32 %v394, 16
      %v421 = vrot.slane %v419, 1
      %v422 = vor.u32 %v417, %v421
      %423 = vrot.lane.b32.xlu0 %v401, 48
      %v424 = vpop.permute.xlu0 %423
      %425 = vrot.lane.b32.xlu0 %v408, 48
      %v426 = vpop.permute.xlu0 %425
      %427 = vrot.lane.b32.xlu0 %v415, 48
      %v428 = vpop.permute.xlu0 %427
      %429 = vrot.lane.b32.xlu0 %v422, 48
      %v430 = vpop.permute.xlu0 %429
      %vm431 = vcmask 130048
      %v434 = vsel %vm431, %v291, %v356
      %v437 = vsel %vm431, %v293, %v358
      %v440 = vsel %vm431, %v295, %v360
      %v443 = vsel %vm431, %v297, %v362
      %vm444 = vcmask 261120
      %v446 = vsel %vm444, %v434, %v376
      %v448 = vsel %vm444, %v437, %v378
      %v450 = vsel %vm444, %v440, %v380
      %v452 = vsel %vm444, %v443, %v382
      %vm453 = vcmask 392192
      %v455 = vsel %vm453, %v446, %v424
      %v457 = vsel %vm453, %v448, %v426
      %v459 = vsel %vm453, %v450, %v428
      %v461 = vsel %vm453, %v452, %v430
      %v462 = vld [vmem:[%s2] sm:$0xf]
      %v463 = vld [vmem:[%s2 + $0x4] sm:$0xf]
      %v464 = vld [vmem:[%s2 + $0x8] sm:$0xf]
      %v465 = vld [vmem:[%s2 + $0xc] sm:$0xf]
      %v466 = vld [vmem:[%s2 + $0x10] sm:$0xf]
      %v467 = vld [vmem:[%s2 + $0x14] sm:$0xf]
      %v468 = vld [vmem:[%s2 + $0x18] sm:$0xf]
      %v469 = vld [vmem:[%s2 + $0x1c] sm:$0xf]
      %v474 = vunpack.c.l.b16 %v455
      %v475 = vunpack.c.l.b16 %v457
      %v476 = vunpack.c.l.b16 %v459
      %v477 = vunpack.c.l.b16 %v461
      %v478 = vpack.c.b16 %v475, %v474
      %v479 = vpack.c.b16 %v477, %v476
      %v488 = vunpack.c.l.b16 %v462
      %v489 = vunpack.c.l.b16 %v463
      %v490 = vunpack.c.l.b16 %v464
      %v491 = vunpack.c.l.b16 %v465
      %v492 = vunpack.c.l.b16 %v466
      %v493 = vunpack.c.l.b16 %v467
      %v494 = vunpack.c.l.b16 %v468
      %v495 = vunpack.c.l.b16 %v469
      %v496 = vpack.c.b16 %v489, %v488
      %v497 = vpack.c.b16 %v491, %v490
      %v498 = vpack.c.b16 %v493, %v492
      %v499 = vpack.c.b16 %v495, %v494
      %vm504 = vcmask 523264
      %v506 = vsel %vm504, %v478, 0
      %v509 = vsel %vm504, %v479, 0
      %511 = vmatprep.subr.bf16.mxu0 0
      %512 = vmatpush1.bf16.msra.mxu0 %v496
      %513 = vmatprep.subr.bf16.mxu0 0
      %514 = vmatpush1.bf16.msra.mxu0 %v497
      %515 = vmatprep.subr.bf16.mxu0 0
      %516 = vmatpush1.bf16.msra.mxu0 %v498
      %517 = vmatprep.subr.bf16.mxu0 0
      %518 = vmatpush1.bf16.msra.mxu0 %v499
      %519 = vmatprep.subr.bf16.mxu0 0
      %520 = vmatpush1.bf16.msra.mxu0 0
      %521 = vmatprep.subr.bf16.mxu0 0
      %522 = vmatpush1.bf16.msra.mxu0 0
      %523 = vmatprep.subr.bf16.mxu0 0
      %524 = vmatpush1.bf16.msra.mxu0 0
      %525 = vmatprep.subr.bf16.mxu0 0
      %526 = vmatpush1.bf16.msra.mxu0 0
      %527 = vmatprep.subr.bf16.mxu0 0
      %528 = vmatpush1.bf16.msra.mxu0 0
      %529 = vmatprep.subr.bf16.mxu0 0
      %530 = vmatpush1.bf16.msra.mxu0 0
      %531 = vmatprep.subr.bf16.mxu0 0
      %532 = vmatpush1.bf16.msra.mxu0 0
      %533 = vmatprep.subr.bf16.mxu0 0
      %534 = vmatpush1.bf16.msra.mxu0 0
      %535 = vmatprep.subr.bf16.mxu0 0
      %536 = vmatpush1.bf16.msra.mxu0 0
      %537 = vmatprep.subr.bf16.mxu0 0
      %538 = vmatpush1.bf16.msra.mxu0 0
      %539 = vmatprep.subr.bf16.mxu0 0
      %540 = vmatpush1.bf16.msra.mxu0 0
      %541 = vmatprep.subr.bf16.mxu0 0
      %542 = vmatpush1.bf16.msra.mxu0 0
      %543 = vmatprep.mubr.bf16.mxu0 0
      %544 = vmatmul.mubr.bf16.gmra.mrb[0].mxu0 %v506
      %v545 = vpop.f32.mrb[0].mxu0
      %v546 = vadd.f32 0.0, %v545
      %v547 = vpop.f32.mrb[0].mxu0
      %v548 = vpop.f32.mrb[0].mxu0
      %v549 = vadd.f32 0.0, %v548
      %v550 = vpop.f32.mrb[0].mxu0
      %551 = vmatprep.mubr.bf16.mxu0 0
      %552 = vmatmul.mubr.bf16.gmra.mrb[0].mxu0 %v509
      %v553 = vpop.f32.mrb[0].mxu0
      %v554 = vadd.f32 0.0, %v553
      %v555 = vpop.f32.mrb[0].mxu0
      %v556 = vpop.f32.mrb[0].mxu0
      %v557 = vadd.f32 0.0, %v556
      %v558 = vpop.f32.mrb[0].mxu0
      %559 = vdwg.mxu0
      %p560 = scmp.eq.s32.totalorder %s21, 0
      // Predicated region
      $region33: #{_lambda_.2} parent=31 // pred_check
        %p561 = pneg %p560
      $region34: #{_lambda_.2} parent=31 // pred_check_branch
        %563 = sbr.rel (%p561) target = $region36
      $region35: #{_lambda_.2} parent=31 // pred_region
        %564 = vst [vmem:[%s289] sm:$0x3] 0.0
      $region36: #{_lambda_.2} parent=31 // pred_fallthru
        _
      %v565 = vadd.f32 %v546, %v549
      %v566 = vadd.f32 %v565, %v554
      %v567 = vadd.f32 %v566, %v557
      %v568 = vrot.slane %v567, 4
      %v569 = vadd.f32 %v567, %v568
      %v570 = vrot.slane %v569, 2
      %v571 = vadd.f32 %v569, %v570
      %v572 = vrot.slane %v571, 1
      %v573 = vadd.f32 %v571, %v572
      %v574 = vmul.f32 %v546, %v546
      %v575 = vmul.f32 %v549, %v549
      %v576 = vmul.f32 %v554, %v554
      %v577 = vmul.f32 %v557, %v557
      %v578 = vadd.f32 %v574, %v575
      %v579 = vadd.f32 %v578, %v576
      %v580 = vadd.f32 %v579, %v577
      %v581 = vrot.slane %v580, 4
      %v582 = vadd.f32 %v580, %v581
      %v583 = vrot.slane %v582, 2
      %v584 = vadd.f32 %v582, %v583
      %v585 = vrot.slane %v584, 1
      %v586 = vadd.f32 %v584, %v585
      %v587 = vld [vmem:[%s289] sm:$0x3]
      %vm588 = vcmask 1040384
      %v589 = vsel %vm588, %v573, %v586
      %v590 = vadd.f32 %v587, %v589
      %591 = vst [vmem:[%s289] sm:$0x3] %v590
      %v592 = vpack.c.bf16 %v549, %v546
      %v593 = vpack.c.bf16 %v557, %v554
      %v596 = vunpack.c.l.b16 %v592
      %v597 = vunpack.c.h.b16 %v592
      %v598 = vunpack.c.l.b16 %v593
      %v599 = vunpack.c.h.b16 %v593
      %v600 = vpack.c.b16 %v596, %v596
      %v601 = vpack.c.b16 %v597, %v597
      %v602 = vpack.c.b16 %v598, %v598
      %v603 = vpack.c.b16 %v599, %v599
      %608 = vst [vmem:[%s282] sm:$0xf] %v600
      %609 = vst [vmem:[%s282 + $0x4] sm:$0xf] %v601
      %610 = vst [vmem:[%s282 + $0x8] sm:$0xf] %v602
      %611 = vst [vmem:[%s282 + $0xc] sm:$0xf] %v603
      %s612 = smul.u32 %s20, 2
      %s613 = sadd.s32 %s612, %s21
      %s614 = smul.u32 4, %s613
      %p615 = scmp.lt.s32.totalorder %s614, 15
      %s616 = scalar_select %p615, %s614, 15
      %s617 = smul.addr %s616, 4
      %s618 = scalar_lea.vmem %s3, %s617
      %p619 = scmp.lt.s32.totalorder %s20, 1
      %s620 = scalar_select %p619, %s20, 1
      %s621 = smul.addr %s620, 2
      %s622 = scalar_lea.vmem %s4, %s621
      // Predicated region
      $region37: #{_lambda_.2} parent=31 // pred_check
        %p623 = pneg %p131
      $region38: #{_lambda_.2} parent=31 // pred_check_branch
        %625 = sbr.rel (%p623) target = $region40
      $region39: #{_lambda_.2} parent=31 // pred_region
        %s626 = smul.u32 %s20, 2
        %s627 = sadd.s32 %s626, %s21
        %s628 = smul.u32 4, %s627
      $region40: #{_lambda_.2} parent=31 // pred_fallthru
        _
      // Predicated region
      $region41: #{_lambda_.2} parent=31 // pred_check
        %p629 = pneg %p157
      $region42: #{_lambda_.2} parent=31 // pred_check_branch
        %631 = sbr.rel (%p629) target = $region44
      $region43: #{_lambda_.2} parent=31 // pred_region
        _
      $region44: #{_lambda_.2} parent=31 // pred_fallthru
        _
    $region32: #{_lambda_.2} parent=5 // pred_fallthru
      _
    %p632 = scmp.le.s32.totalorder 2, %s11
    // Predicated region
    $region45: #{_lambda_.2} parent=5 // pred_check
      %p633 = pneg %p632
    $region46: #{_lambda_.2} parent=5 // pred_check_branch
      %635 = sbr.rel (%p633) target = $region48
    $region47: #{_lambda_.2} parent=5 // pred_region
      %s636 = ssub.s32 %s11, 2
      // Predicated region
      $region49: #{_lambda_.2} parent=47 // pred_check
        %p637 = pneg %p137
      $region50: #{_lambda_.2} parent=47 // pred_check_branch
        %639 = sbr.rel (%p637) target = $region52
      $region51: #{_lambda_.2} parent=47 // pred_region
        %s640 = smul.u32 %s22, 2
        %s641 = sadd.s32 %s640, %s23
        %s642 = smul.u32 4, %s641
        %p643 = scmp.lt.s32.totalorder %s642, 15
        %s644 = scalar_select %p643, %s642, 15
        %s645 = smul.addr %s644, 4
        %s646 = scalar_lea.vmem %s3, %s645
      $region52: #{_lambda_.2} parent=47 // pred_fallthru
        _
      // Predicated region
      $region53: #{_lambda_.2} parent=47 // pred_check
        %p647 = pneg %p163
      $region54: #{_lambda_.2} parent=47 // pred_check_branch
        %649 = sbr.rel (%p647) target = $region56
      $region55: #{_lambda_.2} parent=47 // pred_region
        %p650 = scmp.lt.s32.totalorder %s22, 1
        %s651 = scalar_select %p650, %s22, 1
        %s652 = smul.addr %s651, 2
        %s653 = scalar_lea.vmem %s4, %s652
      $region56: #{_lambda_.2} parent=47 // pred_fallthru
        _
    $region48: #{_lambda_.2} parent=5 // pred_fallthru
      _
  $region6: #{_lambda_.2} parent=0 // loop_footer
    %s15 = sadd.s32 1, %s11
  $region7: #{_lambda_.2} parent=0 // loop_footer_branch
    %10 = sbr.rel target = $region3
  $region8: #{_lambda_.2} parent=0 // loop_exit
    _

</llo_original>
